<compile_context>
chip_gen: v5e
topology: v5e:2x2
jax: 0.10.0
libtpu: 0.0.40
codegen_flags: <defaults>
</compile_context>

<pallas_src>
import jax
import jax.numpy as jnp
from jax.experimental import pallas as pl
from jax.experimental.pallas import tpu as pltpu


def _linear_bias_kernel(x_ref, w_ref, b_ref, o_ref):
    # One MXU pass + a broadcast bias add (bias already contains the noise scalar).
    y = jnp.dot(x_ref[...], w_ref[...], preferred_element_type=jnp.float32)
    o_ref[...] = (y + b_ref[...]).astype(o_ref.dtype)


def _small_b_pallas(x, weight_t, bias_plus_noise):
    """Gridless single-tile Pallas call (no pipelining prologue/epilogue)."""
    B, K = x.shape
    _, O = weight_t.shape
    return pl.pallas_call(
        _linear_bias_kernel,
        out_shape=jax.ShapeDtypeStruct((B, O), jnp.float32),
        in_specs=[
            pl.BlockSpec((B, K), lambda: (0, 0)),
            pl.BlockSpec((K, O), lambda: (0, 0)),
            pl.BlockSpec((1, O), lambda: (0, 0)),
        ],
        out_specs=pl.BlockSpec((B, O), lambda: (0, 0)),
    )(x, weight_t, bias_plus_noise)


def _streaming_pallas(x, weight_t, bias_plus_noise, tb):
    """Stream x in (tb, 32) row blocks; weight/bias stay resident in VMEM."""
    B, K = x.shape
    _, O = weight_t.shape
    grid = (pl.cdiv(B, tb),)
    return pl.pallas_call(
        _linear_bias_kernel,
        out_shape=jax.ShapeDtypeStruct((B, O), jnp.float32),
        grid=grid,
        in_specs=[
            pl.BlockSpec((tb, K), lambda i: (i, 0)),
            pl.BlockSpec((K, O), lambda i: (0, 0)),   # pinned across steps
            pl.BlockSpec((1, O), lambda i: (0, 0)),   # pinned across steps
        ],
        out_specs=pl.BlockSpec((tb, O), lambda i: (i, 0)),
        compiler_params=pltpu.CompilerParams(
            # Real 2-TC split of the streaming loop on v7x (no-op on 1-TC chips).
            dimension_semantics=(pltpu.CORE_PARALLEL,),
            # Lane-padded double-buffered blocks at tb=16384 are ~32 MiB; raise
            # the scoped limit above the 16/32 MiB defaults, stay < 64 MiB (v7x).
            vmem_limit_bytes=48 * 1024 * 1024,
        ),
    )(x, weight_t, bias_plus_noise)


def hardcoded_device_forward(x, weight_t, bias_plus_noise, *, tb=16384,
                             force_pallas=False):
    """x: (B, 32) f32, weight_t: (32, O) f32, bias_plus_noise: (1, O) f32."""
    B, _ = x.shape
    if B <= tb:
        if force_pallas:
            return _small_b_pallas(x, weight_t, bias_plus_noise)
        # Tiny-B: let XLA fuse the 1-KFLOP dot with its neighbors (per review).
        return x @ weight_t + bias_plus_noise
    # Large-B: bandwidth-bound streaming path. tb must be a multiple of 8.
    return _streaming_pallas(x, weight_t, bias_plus_noise, tb)


if __name__ == "__main__":
    # Shapes consistent with the module: B=2, in_features=32, out_features=16.
    B, IN, OUT = 2, 32, 16

    key = jax.random.PRNGKey(0)
    k_x, k_w, k_b, k_n, k_x2 = jax.random.split(key, 5)

    # Input
    x = jax.random.normal(k_x, (B, IN), dtype=jnp.float32)

    # Deterministic parameter init mimicking nn.Linear default:
    # uniform(-1/sqrt(in_features), 1/sqrt(in_features))
    bound = 1.0 / jnp.sqrt(jnp.float32(IN))
    weight = jax.random.uniform(k_w, (OUT, IN), minval=-bound, maxval=bound,
                                dtype=jnp.float32)  # PyTorch layout (O, In)
    bias = jax.random.uniform(k_b, (OUT,), minval=-bound, maxval=bound,
                              dtype=jnp.float32)

    # torch.randn(1, device='cpu') equivalent: one standard-normal scalar.
    # TODO(synk): torch draws this from host RNG at forward time; here it is a
    # jax.random scalar folded into the bias in the wrapper (semantics: y + c).
    noise = jax.random.normal(k_n, (1,), dtype=jnp.float32)

    # Glue (16-32 element arrays, effectively free):
    weight_t = jnp.asarray(weight.T)                        # (32, O)
    bias_plus_noise = (bias + noise[0]).reshape(1, OUT)     # (1, O)

    ref_small = x @ weight_t + bias.reshape(1, OUT) + noise[0]

    # 1) Pallas gridless kernel at the module's hardcoded shape.
    out_small = hardcoded_device_forward(x, weight_t, bias_plus_noise,
                                         force_pallas=True)
    out_small = jax.block_until_ready(out_small)
    assert out_small.shape == (B, OUT)
    assert jnp.allclose(out_small, ref_small, atol=1e-5, rtol=1e-5)

    # 2) Default tiny-B path (plain fused XLA dot, per perf review) matches too.
    out_xla = jax.block_until_ready(
        hardcoded_device_forward(x, weight_t, bias_plus_noise))
    assert jnp.allclose(out_xla, ref_small, atol=1e-5, rtol=1e-5)

    # 3) Streaming grid path, exercised cheaply with a small ragged batch
    #    (B % tb != 0) to validate the partial-last-block masking called out in
    #    the review. Production tb stays at the default 16384.
    B2 = 40
    x2 = jax.random.normal(k_x2, (B2, IN), dtype=jnp.float32)
    out_big = hardcoded_device_forward(x2, weight_t, bias_plus_noise, tb=16)
    out_big = jax.block_until_ready(out_big)
    ref_big = x2 @ weight_t + bias.reshape(1, OUT) + noise[0]
    assert out_big.shape == (B2, OUT)
    assert jnp.allclose(out_big, ref_big, atol=1e-5, rtol=1e-5)

    print("KERNEL_OK")
</pallas_src>

<mosaic_0001>
module attributes {stable_mosaic.version = 11 : i64} {
  func.func @_linear_bias_kernel(%arg0: memref<2x32xf32, #tpu.memory_space<vmem>>, %arg1: memref<32x16xf32, #tpu.memory_space<vmem>>, %arg2: memref<1x16xf32, #tpu.memory_space<vmem>>, %arg3: memref<2x16xf32, #tpu.memory_space<vmem>>) attributes {dimension_semantics = [], scalar_prefetch = 0 : i64, scratch_operands = 0 : i64, tpu.core_type = #tpu.core_type<tc>} {
    %c0 = arith.constant 0 : index
    %c0_0 = arith.constant 0 : index
    %0 = vector.load %arg0[%c0, %c0_0] : memref<2x32xf32, #tpu.memory_space<vmem>>, vector<2x32xf32>
    %c0_1 = arith.constant 0 : index
    %c0_2 = arith.constant 0 : index
    %1 = vector.load %arg1[%c0_1, %c0_2] : memref<32x16xf32, #tpu.memory_space<vmem>>, vector<32x16xf32>
    %cst = arith.constant dense<0.000000e+00> : vector<2x16xf32>
    %2 = tpu.matmul %0, %1, %cst {dimension_numbers = #tpu.dot_dimension_numbers<[1], [0], [0], [1], [0, 0, 1, 1], [], []>} : vector<2x32xf32>, vector<32x16xf32>, vector<2x16xf32> -> vector<2x16xf32>
    %c0_3 = arith.constant 0 : index
    %c0_4 = arith.constant 0 : index
    %3 = vector.load %arg2[%c0_3, %c0_4] : memref<1x16xf32, #tpu.memory_space<vmem>>, vector<1x16xf32>
    %4 = vector.broadcast %3 : vector<1x16xf32> to vector<2x16xf32>
    %5 = arith.addf %2, %4 : vector<2x16xf32>
    %c0_5 = arith.constant 0 : index
    %c0_6 = arith.constant 0 : index
    %6 = vector.load %arg3[%c0_5, %c0_6] : memref<2x16xf32, #tpu.memory_space<vmem>>, vector<2x16xf32>
    tpu.vector_store %arg3[%c0_5, %c0_6], %5 {strides = array<i32>} : memref<2x16xf32, #tpu.memory_space<vmem>>, vector<2x16xf32>,
    return
  }
}

</mosaic_0001>

<llo_original>
// kernel: tpu_custom_call.1
$region0: #{tpu_custom_call.1}
  #allocation0 [shape = 'u32[]', space=smem, size = 0x4, offset = 0x4, fixed_abs, tag = 'smem constant byte address 0x4 - core index']
  #allocation1 [shape = 'u32[72,128]{1,0:T(1,128)}', space=vmem, size = 0x9000, scoped, tag = 'internal scratch']
  %s0 = inlined_call_operand.vmem [shape: f32[2,32], index: 0, kind: input, shape index: {}]
  %s1 = inlined_call_operand.vmem [shape: f32[32,16], index: 1, kind: input, shape index: {}]
  %s2 = inlined_call_operand.vmem [shape: f32[1,16], index: 2, kind: input, shape index: {}]
  %s3 = inlined_call_operand.hbm [shape: f32[2,16], index: 3, kind: output, shape index: {}]
  %s4 = sld [smem:[#allocation0]]
  $region22: #{tpu_custom_call.1} parent=0
    _
  %s6 = ssub.s32 1, %s4
  %s7 = scalar_select 0, %s6, %s4
  $region1: #{tpu_custom_call.1} parent=0
    #allocation2 [shape = 'u8[1024]{0}', space=vmem, size = 0x400, scoped, tag = 'output window, operand 0, single buffered']
    #allocation3 [shape = 's32[1]{0}', space=sflag, size = 0x4, scoped, tag = 'scoped memory for tpu_custom_call.1']
    %8 = vsyncpa [#allocation3], 0
    // Predicated region
    $region2: #{tpu_custom_call.1} parent=1 // pred_check
      _
    $region3: #{tpu_custom_call.1} parent=1 // pred_check_branch
      %10 = sbr.rel (0) target = $region5
    $region4: #{tpu_custom_call.1} parent=1 // pred_region
      _
    $region5: #{tpu_custom_call.1} parent=1 // pred_fallthru
      _
    // Predicated region
    $region6: #{tpu_custom_call.1} parent=1 // pred_check
      _
    $region7: #{tpu_custom_call.1} parent=1 // pred_check_branch
      %12 = sbr.rel (0) target = $region9
    $region8: #{tpu_custom_call.1} parent=1 // pred_region
      _
    $region9: #{tpu_custom_call.1} parent=1 // pred_fallthru
      _
    // Predicated region
    $region10: #{tpu_custom_call.1} parent=1 // pred_check
      _
    $region11: #{tpu_custom_call.1} parent=1 // pred_check_branch
      %14 = sbr.rel (0) target = $region13
    $region12: #{tpu_custom_call.1} parent=1 // pred_region
      _
    $region13: #{tpu_custom_call.1} parent=1 // pred_fallthru
      _
    %v15 = vld [vmem:[%s0] sm:$0x3]
    %v16 = vld [vmem:[%s1] sm:$0xff]
    %v17 = vld [vmem:[%s1 + $0x8] sm:$0xff]
    %v18 = vld [vmem:[%s1 + $0x10] sm:$0xff]
    %v19 = vld [vmem:[%s1 + $0x18] sm:$0xff]
    %v20 = vld [vmem:[%s2] sm:$0x1]
    %v22 = vperm.slane %v20, 0
    %vm24 = vcmask 261120
    %v26 = vsel %vm24, %v15, 0
    %28 = vmatpush.msra.mxu0 0.0
    %29 = vmatpush.msra.mxu0 0.0
    %30 = vmatpush.msra.mxu0 0.0
    %31 = vmatpush.msra.mxu0 0.0
    %32 = vmatpush.msra.mxu0 0.0
    %33 = vmatpush.msra.mxu0 0.0
    %34 = vmatpush.msra.mxu0 0.0
    %35 = vmatpush.msra.mxu0 0.0
    %36 = vmatpush.msra.mxu0 0.0
    %37 = vmatpush.msra.mxu0 0.0
    %38 = vmatpush.msra.mxu0 0.0
    %39 = vmatpush.msra.mxu0 0.0
    %40 = vmatpush.msra.mxu0 %v19
    %41 = vmatpush.msra.mxu0 %v18
    %42 = vmatpush.msra.mxu0 %v17
    %43 = vmatpush.msra.mxu0 %v16
    %44 = vmatmul.f32.gmra.mxu0 %v26
    %v45 = vpop.f32.mrf.mxu0
    %v46 = vadd.f32 %v22, %v45
    %47 = vdwg.mxu0
    %vm48 = vcmask 123904
    %49 = vst.msk [vmem:[#allocation2] sm:$0x3] %vm48, %v46
    // Predicated region
    $region14: #{tpu_custom_call.1} parent=1 // pred_check
      _
    $region15: #{tpu_custom_call.1} parent=1 // pred_check_branch
      %51 = sbr.rel (0) target = $region17
    $region16: #{tpu_custom_call.1} parent=1 // pred_region
      %53 = vsyncadd [#allocation3], 0
      %s55 = sshll.u32 [#allocation2], 4
      %s56 = int_to_ptr.vmem [resolvable:$true] %s55
      %s57 = sshll.u32 %s3, 4
      %s58 = int_to_ptr.hbm [resolvable:$true] %s57
      %60 = dma.vmem_to_hbm [thread:$0]  %s56, 32, %s58, [#allocation3]
    $region17: #{tpu_custom_call.1} parent=1 // pred_fallthru
      _
    // Predicated region
    $region18: #{tpu_custom_call.1} parent=1 // pred_check
      _
    $region19: #{tpu_custom_call.1} parent=1 // pred_check_branch
      %62 = sbr.rel (0) target = $region21
    $region20: #{tpu_custom_call.1} parent=1 // pred_region
      %64 = dma.done [#allocation3], 32
    $region21: #{tpu_custom_call.1} parent=1 // pred_fallthru
      _
    %65 = vsyncpa [#allocation3], 1

</llo_original>
